<compile_context>
chip_gen: v7x
topology: tpu7x:2x2x1
jax: 0.10.0
libtpu: 0.0.40
codegen_flags: <defaults>
</compile_context>

<pallas_src>
import functools
import math

import jax
import jax.numpy as jnp
from jax.experimental import pallas as pl
from jax.experimental.pallas import tpu as pltpu

_MASK_VALUE = -1e30                  # finite "masked" score: no exp(-inf - -inf) NaNs
_VMEM_LIMIT = 32 * 1024 * 1024       # raise scoped VMEM (v5e default is only 16 MiB)


# ------------------------- pass 1: LayerNorm + fused QKV -------------------------

def _ln_qkv_kernel(x_ref, gamma_ref, beta_ref, wqkv_ref, bqkv_ref,
                   q_ref, k_ref, v_ref, *, d_model, scale, eps):
    x = x_ref[...]                                        # (TL, D) f32
    mean = jnp.mean(x, axis=-1, keepdims=True)
    xc = x - mean
    var = jnp.mean(xc * xc, axis=-1, keepdims=True)
    xn = xc * jax.lax.rsqrt(var + eps)                    # LN stats in f32
    xn = xn * gamma_ref[0] + beta_ref[0]

    # One fused (TL, D) @ (D, 3D) MXU matmul, f32 accumulation, f32 bias add.
    qkv = jnp.dot(xn.astype(wqkv_ref.dtype), wqkv_ref[...],
                  preferred_element_type=jnp.float32) + bqkv_ref[0]

    D = d_model
    q_ref[...] = (qkv[:, :D] * scale).astype(q_ref.dtype)   # scale folded into q
    k_ref[...] = qkv[:, D:2 * D].astype(k_ref.dtype)
    v_ref[...] = qkv[:, 2 * D:].astype(v_ref.dtype)


# --------------- pass 2: flash causal attention + out-proj + residual ---------------

def _flash_attn_kernel(q_ref, k_ref, v_ref, x_ref, wo_ref, bo_ref, o_ref,
                       m_sc, l_sc, acc_sc, *, n_heads, d_head, approx_recip):
    TQ = q_ref.shape[0]
    TK = k_ref.shape[0]
    qi = pl.program_id(1)
    ki = pl.program_id(2)
    q_start = qi * TQ
    k_start = ki * TK

    @pl.when(ki == 0)
    def _init():
        m_sc[...] = jnp.full_like(m_sc, _MASK_VALUE)
        l_sc[...] = jnp.zeros_like(l_sc)
        acc_sc[...] = jnp.zeros_like(acc_sc)

    # Skip KV tiles that lie entirely above the causal diagonal (~2x on attention).
    @pl.when(k_start < q_start + TQ)
    def _compute():
        # Causal mask built once per grid step (never a full (H, L, L) tensor).
        rows = q_start + jax.lax.broadcasted_iota(jnp.int32, (TQ, TK), 0)
        cols = k_start + jax.lax.broadcasted_iota(jnp.int32, (TQ, TK), 1)
        allowed = cols <= rows

        # Per-head static column slices keep every matmul operand lane-contiguous
        # in the (seq, d_model) buffers; no (L, H, dh) relayouts through the XLU.
        for h in range(n_heads):
            hsl = slice(h * d_head, (h + 1) * d_head)
            qh = q_ref[:, hsl]                            # (TQ, dh), pre-scaled
            kh = k_ref[:, hsl]                            # (TK, dh)
            vh = v_ref[:, hsl]                            # (TK, dh)

            s = jax.lax.dot_general(                      # (TQ, TK) = q @ k^T
                qh, kh, (((1,), (1,)), ((), ())),
                preferred_element_type=jnp.float32)
            s = jnp.where(allowed, s, _MASK_VALUE)

            m_prev = m_sc[h]                              # (TQ, 1) f32
            m_new = jnp.maximum(m_prev, jnp.max(s, axis=-1, keepdims=True))
            alpha = jnp.exp(m_prev - m_new)
            p = jnp.exp(s - m_new)
            l_sc[h] = alpha * l_sc[h] + jnp.sum(p, axis=-1, keepdims=True)
            pv = jnp.dot(p.astype(vh.dtype), vh,
                         preferred_element_type=jnp.float32)
            acc_sc[:, hsl] = alpha * acc_sc[:, hsl] + pv
            m_sc[h] = m_new

    @pl.when(ki == pl.num_programs(2) - 1)
    def _finalize():
        for h in range(n_heads):
            hsl = slice(h * d_head, (h + 1) * d_head)
            acc_sc[:, hsl] = acc_sc[:, hsl] * pl.reciprocal(l_sc[h],
                                                            approx=approx_recip)
        attn = acc_sc[...].astype(wo_ref.dtype)           # (TQ, D), contiguous, no reshape
        y = jnp.dot(attn, wo_ref[...],
                    preferred_element_type=jnp.float32) + bo_ref[0]
        o_ref[...] = (x_ref[...] + y).astype(o_ref.dtype)


# ------------------------------------ wrapper ------------------------------------

def only_attention_block(x, params, *, n_heads,
                         compute_dtype=jnp.bfloat16,
                         q_tile=128, kv_tile=128):
    """x: (B, L, D) f32. Returns x + MHA(LayerNorm(x)) (causal), like the PyTorch module."""
    B, L, D = x.shape
    assert D % n_heads == 0
    d_head = D // n_heads
    TQ = min(q_tile, L)
    TK = min(kv_tile, L)
    assert L % TQ == 0 and L % TK == 0, "sequence length must divide the tile sizes"
    # TODO(synk): pad D (and 3D) to a multiple of 128 lanes when d_model is not
    # 128-aligned for fully unmasked lane-dense stores; at these sizes the block
    # covers the full D dimension so it compiles as-is.

    cdt = jnp.dtype(compute_dtype)
    scale = d_head ** (-0.5)

    # Fused QKV weight/bias (D, 3D): one weight-stationary MXU pass, 3x fewer bias adds.
    wqkv = jnp.concatenate([params["wq"], params["wk"], params["wv"]], axis=1).astype(cdt)
    bqkv = jnp.concatenate([params["bq"], params["bk"], params["bv"]], axis=1)   # f32
    wo = params["wo"].astype(cdt)

    # ---- pass 1: LayerNorm + fused QKV projection, tiled over (batch, seq) ----
    # Weight/bias/gamma/beta index maps are constant, so Pallas fetches those blocks
    # once and reuses them across grid steps.
    ln_qkv = pl.pallas_call(
        functools.partial(_ln_qkv_kernel, d_model=D, scale=scale, eps=1e-5),
        out_shape=(jax.ShapeDtypeStruct((B, L, D), cdt),
                   jax.ShapeDtypeStruct((B, L, D), cdt),
                   jax.ShapeDtypeStruct((B, L, D), cdt)),
        grid_spec=pltpu.PrefetchScalarGridSpec(
            num_scalar_prefetch=0,
            grid=(B, L // TQ),
            in_specs=[
                pl.BlockSpec((None, TQ, D), lambda b, i: (b, i, 0)),   # x tile (squeezed B)
                pl.BlockSpec((1, D), lambda b, i: (0, 0)),             # LN gamma
                pl.BlockSpec((1, D), lambda b, i: (0, 0)),             # LN beta
                pl.BlockSpec((D, 3 * D), lambda b, i: (0, 0)),         # Wqkv
                pl.BlockSpec((1, 3 * D), lambda b, i: (0, 0)),         # bqkv
            ],
            out_specs=(
                pl.BlockSpec((None, TQ, D), lambda b, i: (b, i, 0)),   # q (pre-scaled)
                pl.BlockSpec((None, TQ, D), lambda b, i: (b, i, 0)),   # k
                pl.BlockSpec((None, TQ, D), lambda b, i: (b, i, 0)),   # v
            ),
        ),
        compiler_params=pltpu.CompilerParams(
            dimension_semantics=("parallel", "parallel"),
            vmem_limit_bytes=_VMEM_LIMIT),
    )
    q, k, v = ln_qkv(x, params["gamma"], params["beta"], wqkv, bqkv)

    # ---- pass 2: flash attention + output projection + residual ----
    attn = pl.pallas_call(
        functools.partial(_flash_attn_kernel, n_heads=n_heads, d_head=d_head,
                          approx_recip=bool(cdt == jnp.dtype(jnp.bfloat16))),
        out_shape=jax.ShapeDtypeStruct((B, L, D), x.dtype),
        grid_spec=pltpu.PrefetchScalarGridSpec(
            num_scalar_prefetch=0,
            grid=(B, L // TQ, L // TK),            # KV (reduction) axis last
            in_specs=[
                pl.BlockSpec((None, TQ, D), lambda b, i, j: (b, i, 0)),  # q
                pl.BlockSpec((None, TK, D), lambda b, i, j: (b, j, 0)),  # k
                pl.BlockSpec((None, TK, D), lambda b, i, j: (b, j, 0)),  # v
                pl.BlockSpec((None, TQ, D), lambda b, i, j: (b, i, 0)),  # x (residual)
                pl.BlockSpec((D, D), lambda b, i, j: (0, 0)),            # Wo
                pl.BlockSpec((1, D), lambda b, i, j: (0, 0)),            # bo
            ],
            out_specs=pl.BlockSpec((None, TQ, D), lambda b, i, j: (b, i, 0)),
            scratch_shapes=[
                pltpu.VMEM((n_heads, TQ, 1), jnp.float32),   # running max  m
                pltpu.VMEM((n_heads, TQ, 1), jnp.float32),   # running sum  l
                pltpu.VMEM((TQ, D), jnp.float32),            # f32 accumulator
            ],
        ),
        compiler_params=pltpu.CompilerParams(
            dimension_semantics=("parallel", "parallel", "arbitrary"),
            vmem_limit_bytes=_VMEM_LIMIT),
    )
    return attn(q, k, v, x, wo, params["bo"])


# ------------------------------ reference & params ------------------------------

def _reference(x, params, n_heads):
    B, L, D = x.shape
    dh = D // n_heads
    mean = jnp.mean(x, -1, keepdims=True)
    var = jnp.mean((x - mean) ** 2, -1, keepdims=True)
    xn = (x - mean) / jnp.sqrt(var + 1e-5) * params["gamma"][0] + params["beta"][0]
    q = xn @ params["wq"] + params["bq"][0]
    k = xn @ params["wk"] + params["bk"][0]
    v = xn @ params["wv"] + params["bv"][0]
    q = q.reshape(B, L, n_heads, dh).transpose(0, 2, 1, 3)
    k = k.reshape(B, L, n_heads, dh).transpose(0, 2, 1, 3)
    v = v.reshape(B, L, n_heads, dh).transpose(0, 2, 1, 3)
    s = (q @ k.transpose(0, 1, 3, 2)) * (dh ** -0.5)
    mask = jnp.tril(jnp.ones((L, L), bool))
    s = jnp.where(mask[None, None], s, -jnp.inf)
    p = jax.nn.softmax(s, axis=-1)
    o = (p @ v).transpose(0, 2, 1, 3).reshape(B, L, D)
    return x + (o @ params["wo"] + params["bo"][0])


def init_params(key, d_model):
    ks = jax.random.split(key, 10)
    bound = 1.0 / math.sqrt(d_model)
    u = lambda k, shape: jax.random.uniform(k, shape, jnp.float32, -bound, bound)
    return {
        # random affine so the LN gamma/beta path is actually exercised
        "gamma": 1.0 + 0.1 * jax.random.normal(ks[8], (1, d_model), jnp.float32),
        "beta": 0.1 * jax.random.normal(ks[9], (1, d_model), jnp.float32),
        # stored already transposed to (in, out)
        "wq": u(ks[0], (d_model, d_model)), "bq": u(ks[1], (1, d_model)),
        "wk": u(ks[2], (d_model, d_model)), "bk": u(ks[3], (1, d_model)),
        "wv": u(ks[4], (d_model, d_model)), "bv": u(ks[5], (1, d_model)),
        "wo": u(ks[6], (d_model, d_model)), "bo": u(ks[7], (1, d_model)),
    }


if __name__ == "__main__":
    B, L, D, H = 2, 64, 32, 4
    key = jax.random.PRNGKey(0)
    kx, kp = jax.random.split(key, 2)
    x = jax.random.normal(kx, (B, L, D), jnp.float32)
    params = init_params(kp, D)
    ref = _reference(x, params, H)

    # (a) f32 compute, multi-tile — exercises online softmax, causal-tile skipping,
    #     scratch accumulation, and the fused out-proj + residual finalize.
    out_f32 = jax.block_until_ready(
        only_attention_block(x, params, n_heads=H, compute_dtype=jnp.float32,
                             q_tile=16, kv_tile=16))
    assert out_f32.shape == (B, L, D)
    assert jnp.allclose(out_f32, ref, atol=1e-4, rtol=1e-4), "f32 kernel mismatch"

    # (b) bf16 MXU path (the performance configuration) — loose check vs f32 ref.
    out_bf16 = jax.block_until_ready(
        only_attention_block(x, params, n_heads=H, compute_dtype=jnp.bfloat16,
                             q_tile=16, kv_tile=16))
    assert jnp.allclose(out_bf16, ref, atol=0.15, rtol=0.15), "bf16 kernel mismatch"

    print("KERNEL_OK")
</pallas_src>

<mosaic_0001>
module attributes {stable_mosaic.version = 11 : i64} {
  func.func @_ln_qkv_kernel(%arg0: i32, %arg1: i32, %arg2: memref<1x16x32xf32, #tpu.memory_space<vmem>>, %arg3: memref<1x32xf32, #tpu.memory_space<vmem>>, %arg4: memref<1x32xf32, #tpu.memory_space<vmem>>, %arg5: memref<32x96xf32, #tpu.memory_space<vmem>>, %arg6: memref<1x96xf32, #tpu.memory_space<vmem>>, %arg7: memref<1x16x32xf32, #tpu.memory_space<vmem>>, %arg8: memref<1x16x32xf32, #tpu.memory_space<vmem>>, %arg9: memref<1x16x32xf32, #tpu.memory_space<vmem>>) attributes {dimension_semantics = [#tpu.dimension_semantics<parallel>, #tpu.dimension_semantics<parallel>], iteration_bounds = array<i64: 2, 4>, scalar_prefetch = 0 : i64, scratch_operands = 0 : i64, tpu.core_type = #tpu.core_type<tc>, window_params = [{transform_indices = @transform_0, window_bounds = array<i64: 1, 16, 32>}, {pipeline_mode = #tpu.pipeline_mode<synchronous>, transform_indices = @transform_1, window_bounds = array<i64: 1, 32>}, {pipeline_mode = #tpu.pipeline_mode<synchronous>, transform_indices = @transform_2, window_bounds = array<i64: 1, 32>}, {pipeline_mode = #tpu.pipeline_mode<synchronous>, transform_indices = @transform_3, window_bounds = array<i64: 32, 96>}, {pipeline_mode = #tpu.pipeline_mode<synchronous>, transform_indices = @transform_4, window_bounds = array<i64: 1, 96>}, {transform_indices = @transform_5, window_bounds = array<i64: 1, 16, 32>}, {transform_indices = @transform_6, window_bounds = array<i64: 1, 16, 32>}, {transform_indices = @transform_7, window_bounds = array<i64: 1, 16, 32>}]} {
    %c0 = arith.constant 0 : index
    %c0_0 = arith.constant 0 : index
    %c0_1 = arith.constant 0 : index
    %0 = vector.load %arg2[%c0, %c0_0, %c0_1] : memref<1x16x32xf32, #tpu.memory_space<vmem>>, vector<1x16x32xf32>
    %1 = vector.shape_cast %0 : vector<1x16x32xf32> to vector<16x32xf32>
    %cst = arith.constant dense<0.000000e+00> : vector<16xf32>
    %2 = vector.multi_reduction <add>, %1, %cst [1] : vector<16x32xf32> to vector<16xf32>
    %3 = vector.shape_cast %2 : vector<16xf32> to vector<16x1xf32>
    %cst_2 = arith.constant 3.200000e+01 : f32
    %4 = vector.broadcast %cst_2 : f32 to vector<16x1xf32>
    %5 = arith.divf %3, %4 : vector<16x1xf32>
    %6 = vector.broadcast %5 : vector<16x1xf32> to vector<16x32xf32>
    %7 = arith.subf %1, %6 : vector<16x32xf32>
    %8 = arith.mulf %7, %7 : vector<16x32xf32>
    %cst_3 = arith.constant dense<0.000000e+00> : vector<16xf32>
    %9 = vector.multi_reduction <add>, %8, %cst_3 [1] : vector<16x32xf32> to vector<16xf32>
    %10 = vector.shape_cast %9 : vector<16xf32> to vector<16x1xf32>
    %cst_4 = arith.constant 3.200000e+01 : f32
    %11 = vector.broadcast %cst_4 : f32 to vector<16x1xf32>
    %12 = arith.divf %10, %11 : vector<16x1xf32>
    %cst_5 = arith.constant 9.99999974E-6 : f32
    %13 = vector.broadcast %cst_5 : f32 to vector<16x1xf32>
    %14 = arith.addf %12, %13 : vector<16x1xf32>
    %15 = math.rsqrt %14 : vector<16x1xf32>
    %16 = vector.broadcast %15 : vector<16x1xf32> to vector<16x32xf32>
    %17 = arith.mulf %7, %16 : vector<16x32xf32>
    %c0_6 = arith.constant 0 : index
    %c0_7 = arith.constant 0 : index
    %18 = vector.load %arg3[%c0_6, %c0_7] : memref<1x32xf32, #tpu.memory_space<vmem>>, vector<1x32xf32>
    %19 = vector.shape_cast %18 : vector<1x32xf32> to vector<32xf32>
    %20 = vector.shape_cast %19 : vector<32xf32> to vector<1x32xf32>
    %21 = vector.broadcast %20 : vector<1x32xf32> to vector<16x32xf32>
    %22 = arith.mulf %17, %21 : vector<16x32xf32>
    %c0_8 = arith.constant 0 : index
    %c0_9 = arith.constant 0 : index
    %23 = vector.load %arg4[%c0_8, %c0_9] : memref<1x32xf32, #tpu.memory_space<vmem>>, vector<1x32xf32>
    %24 = vector.shape_cast %23 : vector<1x32xf32> to vector<32xf32>
    %25 = vector.shape_cast %24 : vector<32xf32> to vector<1x32xf32>
    %26 = vector.broadcast %25 : vector<1x32xf32> to vector<16x32xf32>
    %27 = arith.addf %22, %26 : vector<16x32xf32>
    %c0_10 = arith.constant 0 : index
    %c0_11 = arith.constant 0 : index
    %28 = vector.load %arg5[%c0_10, %c0_11] : memref<32x96xf32, #tpu.memory_space<vmem>>, vector<32x96xf32>
    %cst_12 = arith.constant dense<0.000000e+00> : vector<16x96xf32>
    %29 = tpu.matmul %27, %28, %cst_12 {dimension_numbers = #tpu.dot_dimension_numbers<[1], [0], [0], [1], [0, 0, 1, 1], [], []>} : vector<16x32xf32>, vector<32x96xf32>, vector<16x96xf32> -> vector<16x96xf32>
    %c0_13 = arith.constant 0 : index
    %c0_14 = arith.constant 0 : index
    %30 = vector.load %arg6[%c0_13, %c0_14] : memref<1x96xf32, #tpu.memory_space<vmem>>, vector<1x96xf32>
    %31 = vector.shape_cast %30 : vector<1x96xf32> to vector<96xf32>
    %32 = vector.shape_cast %31 : vector<96xf32> to vector<1x96xf32>
    %33 = vector.broadcast %32 : vector<1x96xf32> to vector<16x96xf32>
    %34 = arith.addf %29, %33 : vector<16x96xf32>
    %35 = vector.extract_strided_slice %34 {offsets = [0, 0], sizes = [16, 32], strides = [1, 1]} : vector<16x96xf32> to vector<16x32xf32>
    %cst_15 = arith.constant 0.353553385 : f32
    %36 = vector.broadcast %cst_15 : f32 to vector<16x32xf32>
    %37 = arith.mulf %35, %36 : vector<16x32xf32>
    %c0_16 = arith.constant 0 : index
    %c0_17 = arith.constant 0 : index
    %c0_18 = arith.constant 0 : index
    %38 = vector.load %arg7[%c0_16, %c0_17, %c0_18] : memref<1x16x32xf32, #tpu.memory_space<vmem>>, vector<1x16x32xf32>
    %39 = vector.shape_cast %38 : vector<1x16x32xf32> to vector<16x32xf32>
    %40 = vector.shape_cast %37 : vector<16x32xf32> to vector<1x16x32xf32>
    tpu.vector_store %arg7[%c0_16, %c0_17, %c0_18], %40 {strides = array<i32>} : memref<1x16x32xf32, #tpu.memory_space<vmem>>, vector<1x16x32xf32>,
    %41 = vector.extract_strided_slice %34 {offsets = [0, 32], sizes = [16, 32], strides = [1, 1]} : vector<16x96xf32> to vector<16x32xf32>
    %c0_19 = arith.constant 0 : index
    %c0_20 = arith.constant 0 : index
    %c0_21 = arith.constant 0 : index
    %42 = vector.load %arg8[%c0_19, %c0_20, %c0_21] : memref<1x16x32xf32, #tpu.memory_space<vmem>>, vector<1x16x32xf32>
    %43 = vector.shape_cast %42 : vector<1x16x32xf32> to vector<16x32xf32>
    %44 = vector.shape_cast %41 : vector<16x32xf32> to vector<1x16x32xf32>
    tpu.vector_store %arg8[%c0_19, %c0_20, %c0_21], %44 {strides = array<i32>} : memref<1x16x32xf32, #tpu.memory_space<vmem>>, vector<1x16x32xf32>,
    %45 = vector.extract_strided_slice %34 {offsets = [0, 64], sizes = [16, 32], strides = [1, 1]} : vector<16x96xf32> to vector<16x32xf32>
    %c0_22 = arith.constant 0 : index
    %c0_23 = arith.constant 0 : index
    %c0_24 = arith.constant 0 : index
    %46 = vector.load %arg9[%c0_22, %c0_23, %c0_24] : memref<1x16x32xf32, #tpu.memory_space<vmem>>, vector<1x16x32xf32>
    %47 = vector.shape_cast %46 : vector<1x16x32xf32> to vector<16x32xf32>
    %48 = vector.shape_cast %45 : vector<16x32xf32> to vector<1x16x32xf32>
    tpu.vector_store %arg9[%c0_22, %c0_23, %c0_24], %48 {strides = array<i32>} : memref<1x16x32xf32, #tpu.memory_space<vmem>>, vector<1x16x32xf32>,
    return
  }
  func.func @transform_0(%arg0: i32, %arg1: i32) -> (i32, i32, i32) {
    %c0_i32 = arith.constant 0 : i32
    %c0_i32_0 = arith.constant 0 : i32
    return %arg0, %arg1, %c0_i32 : i32, i32, i32
  }
  func.func @transform_1(%arg0: i32, %arg1: i32) -> (i32, i32) {
    %c0_i32 = arith.constant 0 : i32
    %c0_i32_0 = arith.constant 0 : i32
    %c0_i32_1 = arith.constant 0 : i32
    return %c0_i32, %c0_i32_0 : i32, i32
  }
  func.func @transform_2(%arg0: i32, %arg1: i32) -> (i32, i32) {
    %c0_i32 = arith.constant 0 : i32
    %c0_i32_0 = arith.constant 0 : i32
    %c0_i32_1 = arith.constant 0 : i32
    return %c0_i32, %c0_i32_0 : i32, i32
  }
  func.func @transform_3(%arg0: i32, %arg1: i32) -> (i32, i32) {
    %c0_i32 = arith.constant 0 : i32
    %c0_i32_0 = arith.constant 0 : i32
    %c0_i32_1 = arith.constant 0 : i32
    return %c0_i32, %c0_i32_0 : i32, i32
  }
  func.func @transform_4(%arg0: i32, %arg1: i32) -> (i32, i32) {
    %c0_i32 = arith.constant 0 : i32
    %c0_i32_0 = arith.constant 0 : i32
    %c0_i32_1 = arith.constant 0 : i32
    return %c0_i32, %c0_i32_0 : i32, i32
  }
  func.func @transform_5(%arg0: i32, %arg1: i32) -> (i32, i32, i32) {
    %c0_i32 = arith.constant 0 : i32
    %c0_i32_0 = arith.constant 0 : i32
    return %arg0, %arg1, %c0_i32 : i32, i32, i32
  }
  func.func @transform_6(%arg0: i32, %arg1: i32) -> (i32, i32, i32) {
    %c0_i32 = arith.constant 0 : i32
    %c0_i32_0 = arith.constant 0 : i32
    return %arg0, %arg1, %c0_i32 : i32, i32, i32
  }
  func.func @transform_7(%arg0: i32, %arg1: i32) -> (i32, i32, i32) {
    %c0_i32 = arith.constant 0 : i32
    %c0_i32_0 = arith.constant 0 : i32
    return %arg0, %arg1, %c0_i32 : i32, i32, i32
  }
}

</mosaic_0001>

<llo_original>
// kernel: tpu_custom_call.1
$region0: #{tpu_custom_call.1}
  #allocation0 [shape = 'u32[]', space=smem, size = 0x4, offset = 0x4, fixed_abs, tag = 'smem constant byte address 0x4 - core index']
  #allocation1 [shape = 'u32[144,128]{1,0:T(1,128)}', space=vmem, size = 0x12000, scoped, tag = 'internal scratch']
  %s0 = inlined_call_operand.vmem [shape: f32[2,64,32], index: 0, kind: input, shape index: {}]
  %s1 = inlined_call_operand.vmem [shape: f32[1,32], index: 1, kind: input, shape index: {}]
  %s2 = inlined_call_operand.vmem [shape: f32[1,32], index: 2, kind: input, shape index: {}]
  %s3 = inlined_call_operand.vmem [shape: f32[32,96], index: 3, kind: input, shape index: {}]
  %s4 = inlined_call_operand.vmem [shape: f32[1,96], index: 4, kind: input, shape index: {}]
  %s5 = inlined_call_operand.vmem [shape: f32[2,64,32], index: 5, kind: output, shape index: {0}]
  %s6 = inlined_call_operand.vmem [shape: f32[2,64,32], index: 6, kind: output, shape index: {1}]
  %s7 = inlined_call_operand.vmem [shape: f32[2,64,32], index: 7, kind: output, shape index: {2}]
  %8 = xla_tuple %s5, %s6, %s7
  %s9 = sld [smem:[#allocation0]]
  $region69: #{tpu_custom_call.1} parent=0
    _
  %s11 = ssub.s32 1, %s9
  %s12 = scalar_select 0, %s11, %s9
  loop: start=0, step=1, limit=10
  $region2: #{tpu_custom_call.1} parent=0 // loop_pre_header
    _
  $region3: #{tpu_custom_call.1} parent=0 // loop_header
    %s14 = sphi 0, %s18
    %p15 = scmp.ge.s32.totalorder %s14, 10
    %s21 = sphi 0, %s33
    %s22 = sphi 0, %s29
    %s23 = sphi 0, %s21
    %s24 = sphi 0, %s22
    %s25 = sphi 0, %s23
    %s26 = sphi 0, %s24
    %s38 = sphi 0, %s40
    %s41 = sphi 0, %s38
    %s42 = sphi 0, %s41
    %s58 = sphi 0, %s42
    %s62 = sphi 0, %s62
    %s64 = sphi 0, %s62
    %s65 = sphi 0, %s64
    %s79 = sphi 0, %s65
    %s83 = sphi 0, %s83
    %s85 = sphi 0, %s83
    %s86 = sphi 0, %s85
    %s100 = sphi 0, %s86
    %s104 = sphi 0, %s104
    %s106 = sphi 0, %s104
    %s107 = sphi 0, %s106
    %s121 = sphi 0, %s107
    %s125 = sphi 0, %s125
    %s127 = sphi 0, %s125
    %s128 = sphi 0, %s127
    %s142 = sphi 0, %s128
    %s150 = sphi 0, %s152
    %s153 = sphi 0, %s150
    %s154 = sphi 0, %s153
    %s170 = sphi 0, %s154
    %s178 = sphi 0, %s180
    %s181 = sphi 0, %s178
    %s182 = sphi 0, %s181
    %s198 = sphi 0, %s182
    %s206 = sphi 0, %s208
    %s209 = sphi 0, %s206
    %s210 = sphi 0, %s209
    %s226 = sphi 0, %s210
  $region4: #{tpu_custom_call.1} parent=0 // loop_header_branch
    %17 = sbr.rel (%p15) target = $region8
  $region5: #{tpu_custom_call.1} parent=0 // loop_body
    %s19 = ssub.s32 %s14, 1
    %s20 = ssub.s32 %s14, 2
    %s27 = sadd.s32 1, %s22
    %p28 = scmp.ge.s32.totalorder %s27, 4
    %s29 = scalar_select %p28, 0, %s27
    %s30 = sadd.s32 1, %s21
    %s31 = scalar_select %p28, %s30, %s21
    %p32 = scmp.ge.s32.totalorder %s31, 2
    %s33 = scalar_select %p32, 0, %s31
    %s34 = ssub.s32 %s21, %s33
    %s35 = ssub.s32 %s22, %s29
    %s36 = sor.u32 %s34, %s35
    %p37 = scmp.eq.s32.totalorder %s36, 0
    %s39 = sadd.s32 %s38, 1
    %s40 = scalar_select %p37, %s38, %s39
    %p43 = pneg %p37
    %p44 = scmp.eq.s32.totalorder %s14, 7
    %p45 = por %p43, %p44
    %p46 = scmp.ne.s32.totalorder %s38, %s41
    %p47 = scmp.eq.s32.totalorder %s14, 0
    %p48 = por %p46, %p47
    %p49 = scmp.ne.s32.totalorder %s38, %s41
    %p50 = scmp.eq.s32.totalorder %s19, 7
    %p51 = por %p49, %p50
    %p52 = scmp.ne.s32.totalorder %s41, %s42
    %p53 = scmp.eq.s32.totalorder %s19, 0
    %p54 = por %p52, %p53
    %p55 = scmp.ne.s32.totalorder %s41, %s42
    %p56 = scmp.eq.s32.totalorder %s20, 7
    %p57 = por %p55, %p56
    %p59 = scmp.ne.s32.totalorder %s42, %s58
    %p60 = scmp.eq.s32.totalorder %s20, 0
    %p61 = por %p59, %p60
    %s63 = sadd.s32 %s62, 1
    %p66 = scmp.eq.s32.totalorder %s14, 7
    %p67 = scmp.ne.s32.totalorder %s62, %s64
    %p68 = scmp.eq.s32.totalorder %s14, 0
    %p69 = por %p67, %p68
    %p70 = scmp.ne.s32.totalorder %s62, %s64
    %p71 = scmp.eq.s32.totalorder %s19, 7
    %p72 = por %p70, %p71
    %p73 = scmp.ne.s32.totalorder %s64, %s65
    %p74 = scmp.eq.s32.totalorder %s19, 0
    %p75 = por %p73, %p74
    %p76 = scmp.ne.s32.totalorder %s64, %s65
    %p77 = scmp.eq.s32.totalorder %s20, 7
    %p78 = por %p76, %p77
    %p80 = scmp.ne.s32.totalorder %s65, %s79
    %p81 = scmp.eq.s32.totalorder %s20, 0
    %p82 = por %p80, %p81
    %s84 = sadd.s32 %s83, 1
    %p87 = scmp.eq.s32.totalorder %s14, 7
    %p88 = scmp.ne.s32.totalorder %s83, %s85
    %p89 = scmp.eq.s32.totalorder %s14, 0
    %p90 = por %p88, %p89
    %p91 = scmp.ne.s32.totalorder %s83, %s85
    %p92 = scmp.eq.s32.totalorder %s19, 7
    %p93 = por %p91, %p92
    %p94 = scmp.ne.s32.totalorder %s85, %s86
    %p95 = scmp.eq.s32.totalorder %s19, 0
    %p96 = por %p94, %p95
    %p97 = scmp.ne.s32.totalorder %s85, %s86
    %p98 = scmp.eq.s32.totalorder %s20, 7
    %p99 = por %p97, %p98
    %p101 = scmp.ne.s32.totalorder %s86, %s100
    %p102 = scmp.eq.s32.totalorder %s20, 0
    %p103 = por %p101, %p102
    %s105 = sadd.s32 %s104, 1
    %p108 = scmp.eq.s32.totalorder %s14, 7
    %p109 = scmp.ne.s32.totalorder %s104, %s106
    %p110 = scmp.eq.s32.totalorder %s14, 0
    %p111 = por %p109, %p110
    %p112 = scmp.ne.s32.totalorder %s104, %s106
    %p113 = scmp.eq.s32.totalorder %s19, 7
    %p114 = por %p112, %p113
    %p115 = scmp.ne.s32.totalorder %s106, %s107
    %p116 = scmp.eq.s32.totalorder %s19, 0
    %p117 = por %p115, %p116
    %p118 = scmp.ne.s32.totalorder %s106, %s107
    %p119 = scmp.eq.s32.totalorder %s20, 7
    %p120 = por %p118, %p119
    %p122 = scmp.ne.s32.totalorder %s107, %s121
    %p123 = scmp.eq.s32.totalorder %s20, 0
    %p124 = por %p122, %p123
    %s126 = sadd.s32 %s125, 1
    %p129 = scmp.eq.s32.totalorder %s14, 7
    %p130 = scmp.ne.s32.totalorder %s125, %s127
    %p131 = scmp.eq.s32.totalorder %s14, 0
    %p132 = por %p130, %p131
    %p133 = scmp.ne.s32.totalorder %s125, %s127
    %p134 = scmp.eq.s32.totalorder %s19, 7
    %p135 = por %p133, %p134
    %p136 = scmp.ne.s32.totalorder %s127, %s128
    %p137 = scmp.eq.s32.totalorder %s19, 0
    %p138 = por %p136, %p137
    %p139 = scmp.ne.s32.totalorder %s127, %s128
    %p140 = scmp.eq.s32.totalorder %s20, 7
    %p141 = por %p139, %p140
    %p143 = scmp.ne.s32.totalorder %s128, %s142
    %p144 = scmp.eq.s32.totalorder %s20, 0
    %p145 = por %p143, %p144
    %s146 = ssub.s32 %s21, %s33
    %s147 = ssub.s32 %s22, %s29
    %s148 = sor.u32 %s146, %s147
    %p149 = scmp.eq.s32.totalorder %s148, 0
    %s151 = sadd.s32 %s150, 1
    %s152 = scalar_select %p149, %s150, %s151
    %p155 = pneg %p149
    %p156 = scmp.eq.s32.totalorder %s14, 7
    %p157 = por %p155, %p156
    %p158 = scmp.ne.s32.totalorder %s150, %s153
    %p159 = scmp.eq.s32.totalorder %s14, 0
    %p160 = por %p158, %p159
    %p161 = scmp.ne.s32.totalorder %s150, %s153
    %p162 = scmp.eq.s32.totalorder %s19, 7
    %p163 = por %p161, %p162
    %p164 = scmp.ne.s32.totalorder %s153, %s154
    %p165 = scmp.eq.s32.totalorder %s19, 0
    %p166 = por %p164, %p165
    %p167 = scmp.ne.s32.totalorder %s153, %s154
    %p168 = scmp.eq.s32.totalorder %s20, 7
    %p169 = por %p167, %p168
    %p171 = scmp.ne.s32.totalorder %s154, %s170
    %p172 = scmp.eq.s32.totalorder %s20, 0
    %p173 = por %p171, %p172
    %s174 = ssub.s32 %s21, %s33
    %s175 = ssub.s32 %s22, %s29
    %s176 = sor.u32 %s174, %s175
    %p177 = scmp.eq.s32.totalorder %s176, 0
    %s179 = sadd.s32 %s178, 1
    %s180 = scalar_select %p177, %s178, %s179
    %p183 = pneg %p177
    %p184 = scmp.eq.s32.totalorder %s14, 7
    %p185 = por %p183, %p184
    %p186 = scmp.ne.s32.totalorder %s178, %s181
    %p187 = scmp.eq.s32.totalorder %s14, 0
    %p188 = por %p186, %p187
    %p189 = scmp.ne.s32.totalorder %s178, %s181
    %p190 = scmp.eq.s32.totalorder %s19, 7
    %p191 = por %p189, %p190
    %p192 = scmp.ne.s32.totalorder %s181, %s182
    %p193 = scmp.eq.s32.totalorder %s19, 0
    %p194 = por %p192, %p193
    %p195 = scmp.ne.s32.totalorder %s181, %s182
    %p196 = scmp.eq.s32.totalorder %s20, 7
    %p197 = por %p195, %p196
    %p199 = scmp.ne.s32.totalorder %s182, %s198
    %p200 = scmp.eq.s32.totalorder %s20, 0
    %p201 = por %p199, %p200
    %s202 = ssub.s32 %s21, %s33
    %s203 = ssub.s32 %s22, %s29
    %s204 = sor.u32 %s202, %s203
    %p205 = scmp.eq.s32.totalorder %s204, 0
    %s207 = sadd.s32 %s206, 1
    %s208 = scalar_select %p205, %s206, %s207
    %p211 = pneg %p205
    %p212 = scmp.eq.s32.totalorder %s14, 7
    %p213 = por %p211, %p212
    %p214 = scmp.ne.s32.totalorder %s206, %s209
    %p215 = scmp.eq.s32.totalorder %s14, 0
    %p216 = por %p214, %p215
    %p217 = scmp.ne.s32.totalorder %s206, %s209
    %p218 = scmp.eq.s32.totalorder %s19, 7
    %p219 = por %p217, %p218
    %p220 = scmp.ne.s32.totalorder %s209, %s210
    %p221 = scmp.eq.s32.totalorder %s19, 0
    %p222 = por %p220, %p221
    %p223 = scmp.ne.s32.totalorder %s209, %s210
    %p224 = scmp.eq.s32.totalorder %s20, 7
    %p225 = por %p223, %p224
    %p227 = scmp.ne.s32.totalorder %s210, %s226
    %p228 = scmp.eq.s32.totalorder %s20, 0
    %p229 = por %p227, %p228
    %p230 = scmp.le.s32.totalorder 1, %s14
    %p231 = scmp.lt.s32.totalorder %s14, 9
    %p232 = pnand %p230, %p231
    %p233 = pneg %p232
    // Predicated region
    $region9: #{tpu_custom_call.1} parent=5 // pred_check
      _
    $region10: #{tpu_custom_call.1} parent=5 // pred_check_branch
      %235 = sbr.rel (%p232) target = $region12
    $region11: #{tpu_custom_call.1} parent=5 // pred_region
      %s236 = ssub.s32 %s14, 1
      // Predicated region
      $region13: #{tpu_custom_call.1} parent=11 // pred_check
        %p237 = pneg %p75
      $region14: #{tpu_custom_call.1} parent=11 // pred_check_branch
        %239 = sbr.rel (%p237) target = $region16
      $region15: #{tpu_custom_call.1} parent=11 // pred_region
        _
      $region16: #{tpu_custom_call.1} parent=11 // pred_fallthru
        _
      // Predicated region
      $region17: #{tpu_custom_call.1} parent=11 // pred_check
        %p240 = pneg %p96
      $region18: #{tpu_custom_call.1} parent=11 // pred_check_branch
        %242 = sbr.rel (%p240) target = $region20
      $region19: #{tpu_custom_call.1} parent=11 // pred_region
        _
      $region20: #{tpu_custom_call.1} parent=11 // pred_fallthru
        _
      // Predicated region
      $region21: #{tpu_custom_call.1} parent=11 // pred_check
        %p243 = pneg %p117
      $region22: #{tpu_custom_call.1} parent=11 // pred_check_branch
        %245 = sbr.rel (%p243) target = $region24
      $region23: #{tpu_custom_call.1} parent=11 // pred_region
        _
      $region24: #{tpu_custom_call.1} parent=11 // pred_fallthru
        _
      // Predicated region
      $region25: #{tpu_custom_call.1} parent=11 // pred_check
        %p246 = pneg %p138
      $region26: #{tpu_custom_call.1} parent=11 // pred_check_branch
        %248 = sbr.rel (%p246) target = $region28
      $region27: #{tpu_custom_call.1} parent=11 // pred_region
        _
      $region28: #{tpu_custom_call.1} parent=11 // pred_fallthru
        _
    $region12: #{tpu_custom_call.1} parent=5 // pred_fallthru
      _
    %p249 = scmp.lt.s32.totalorder %s14, 8
    // Predicated region
    $region29: #{tpu_custom_call.1} parent=5 // pred_check
      %p250 = pneg %p249
    $region30: #{tpu_custom_call.1} parent=5 // pred_check_branch
      %252 = sbr.rel (%p250) target = $region32
    $region31: #{tpu_custom_call.1} parent=5 // pred_region
      // Predicated region
      $region33: #{tpu_custom_call.1} parent=31 // pred_check
        %p253 = pneg %p48
      $region34: #{tpu_custom_call.1} parent=31 // pred_check_branch
        %255 = sbr.rel (%p253) target = $region36
      $region35: #{tpu_custom_call.1} parent=31 // pred_region
        %s256 = smul.u32 2, %s22
        %p257 = scmp.lt.s32.totalorder %s21, 1
        %s258 = scalar_select %p257, %s21, 1
        %p259 = scmp.lt.s32.totalorder %s256, 7
        %s260 = scalar_select %p259, %s256, 7
        %s261 = smul.addr %s258, 8
        %s262 = sadd.s32 %s260, %s261
        %s263 = smul.addr %s262, 8
        %s264 = scalar_lea.vmem %s0, %s263
        %s265 = smul.u32 2, %s22
      $region36: #{tpu_custom_call.1} parent=31 // pred_fallthru
        _
    $region32: #{tpu_custom_call.1} parent=5 // pred_fallthru
      _
    %p266 = scmp.le.s32.totalorder 1, %s14
    %p267 = scmp.lt.s32.totalorder %s14, 9
    %p268 = pnand %p266, %p267
    %p269 = pneg %p268
    // Predicated region
    $region37: #{tpu_custom_call.1} parent=5 // pred_check
      _
    $region38: #{tpu_custom_call.1} parent=5 // pred_check_branch
      %271 = sbr.rel (%p268) target = $region40
    $region39: #{tpu_custom_call.1} parent=5 // pred_region
      %s272 = ssub.s32 %s14, 1
      %s273 = smul.u32 2, %s24
      %p274 = scmp.lt.s32.totalorder %s23, 1
      %s275 = scalar_select %p274, %s23, 1
      %p276 = scmp.lt.s32.totalorder %s273, 7
      %s277 = scalar_select %p276, %s273, 7
      %s278 = smul.addr %s275, 8
      %s279 = sadd.s32 %s277, %s278
      %s280 = smul.addr %s279, 8
      %s281 = scalar_lea.vmem %s0, %s280
      %p282 = pneg %p54
      %p283 = pneg %p51
      %p284 = pneg %p75
      %p285 = pneg %p72
      %p286 = pneg %p96
      %p287 = pneg %p93
      %p288 = pneg %p117
      %p289 = pneg %p114
      %p290 = pneg %p138
      %p291 = pneg %p135
      %p292 = pneg %p166
      %p293 = pneg %p163
      %s294 = smul.u32 2, %s24
      %p295 = scmp.lt.s32.totalorder %s23, 1
      %s296 = scalar_select %p295, %s23, 1
      %p297 = scmp.lt.s32.totalorder %s294, 7
      %s298 = scalar_select %p297, %s294, 7
      %s299 = smul.addr %s296, 8
      %s300 = sadd.s32 %s298, %s299
      %s301 = smul.addr %s300, 8
      %s302 = scalar_lea.vmem %s5, %s301
      %p303 = pneg %p194
      %p304 = pneg %p191
      %s305 = smul.u32 2, %s24
      %p306 = scmp.lt.s32.totalorder %s23, 1
      %s307 = scalar_select %p306, %s23, 1
      %p308 = scmp.lt.s32.totalorder %s305, 7
      %s309 = scalar_select %p308, %s305, 7
      %s310 = smul.addr %s307, 8
      %s311 = sadd.s32 %s309, %s310
      %s312 = smul.addr %s311, 8
      %s313 = scalar_lea.vmem %s6, %s312
      %p314 = pneg %p222
      %p315 = pneg %p219
      %s316 = smul.u32 2, %s24
      %p317 = scmp.lt.s32.totalorder %s23, 1
      %s318 = scalar_select %p317, %s23, 1
      %p319 = scmp.lt.s32.totalorder %s316, 7
      %s320 = scalar_select %p319, %s316, 7
      %s321 = smul.addr %s318, 8
      %s322 = sadd.s32 %s320, %s321
      %s323 = smul.addr %s322, 8
      %s324 = scalar_lea.vmem %s7, %s323
      %s325 = smul.u32 2, %s24
      %p326 = scmp.lt.s32.totalorder %s23, 1
      %s327 = scalar_select %p326, %s23, 1
      %p328 = scmp.lt.s32.totalorder %s325, 7
      %s329 = scalar_select %p328, %s325, 7
      %s330 = smul.addr %s327, 8
      %s331 = sadd.s32 %s329, %s330
      %s332 = smul.addr %s331, 8
      %s333 = scalar_lea.vmem %s0, %s332
      %s334 = smul.u32 2, %s24
      %s335 = smul.u32 2, %s24
      %p336 = scmp.lt.s32.totalorder %s23, 1
      %s337 = scalar_select %p336, %s23, 1
      %p338 = scmp.lt.s32.totalorder %s335, 7
      %s339 = scalar_select %p338, %s335, 7
      %s340 = smul.addr %s337, 8
      %s341 = sadd.s32 %s339, %s340
      %s342 = smul.addr %s341, 8
      %s343 = scalar_lea.vmem %s5, %s342
      %s344 = smul.u32 2, %s24
      %s345 = smul.u32 2, %s24
      %p346 = scmp.lt.s32.totalorder %s23, 1
      %s347 = scalar_select %p346, %s23, 1
      %p348 = scmp.lt.s32.totalorder %s345, 7
      %s349 = scalar_select %p348, %s345, 7
      %s350 = smul.addr %s347, 8
      %s351 = sadd.s32 %s349, %s350
      %s352 = smul.addr %s351, 8
      %s353 = scalar_lea.vmem %s6, %s352
      %s354 = smul.u32 2, %s24
      %s355 = smul.u32 2, %s24
      %p356 = scmp.lt.s32.totalorder %s23, 1
      %s357 = scalar_select %p356, %s23, 1
      %p358 = scmp.lt.s32.totalorder %s355, 7
      %s359 = scalar_select %p358, %s355, 7
      %s360 = smul.addr %s357, 8
      %s361 = sadd.s32 %s359, %s360
      %s362 = smul.addr %s361, 8
      %s363 = scalar_lea.vmem %s7, %s362
      %s364 = smul.u32 2, %s24
      %v365 = vld [vmem:[%s333] sm:$0xff]
      %v366 = vld [vmem:[%s333 + $0x8] sm:$0xff]
      %vm367 = vcmask 261120
      %v368 = vsel %vm367, %v365, 0.0
      %369 = vadd.xlane.f32.xlu0 %v368
      %v370 = vpop.xlane.xlu0 %369
      %v371 = vsel %vm367, %v366, 0.0
      %372 = vadd.xlane.f32.xlu0 %v371
      %v373 = vpop.xlane.xlu0 %372
      %v374 = vrcp.pop 32.0
      %v375 = vmul.f32 %v370, %v374
      %v376 = vmul.f32 %v373, %v374
      %v377 = vsub.f32 %v365, %v375
      %v378 = vsub.f32 %v366, %v376
      %v379 = vmul.f32 %v377, %v377
      %v380 = vmul.f32 %v378, %v378
      %v381 = vsel %vm367, %v379, 0.0
      %382 = vadd.xlane.f32.xlu0 %v381
      %v383 = vpop.xlane.xlu0 %382
      %v384 = vsel %vm367, %v380, 0.0
      %385 = vadd.xlane.f32.xlu0 %v384
      %v386 = vpop.xlane.xlu0 %385
      %v387 = vmul.f32 %v383, %v374
      %v388 = vmul.f32 %v386, %v374
      %v389 = vadd.f32 %v387, 1e-05
      %v390 = vadd.f32 %v388, 1e-05
      %v391 = vrsqrt.pop %v389
      %v392 = vrsqrt.pop %v390
      %v393 = vmul.f32 %v377, %v391
      %v394 = vmul.f32 %v378, %v392
      %v395 = vld [vmem:[%s1] sm:$0x1]
      %v397 = vlaneseq
      %v398 = vshrl.u32 %v397, 7
      %v399 = vsub.s32 0, %v398
      %v400 = vrot.slane %v395, %v399
      %v402 = vmul.f32 %v393, %v400
      %v403 = vmul.f32 %v394, %v400
      %v404 = vld [vmem:[%s2] sm:$0x1]
      %v406 = vlaneseq
      %v407 = vshrl.u32 %v406, 7
      %v408 = vsub.s32 0, %v407
      %v409 = vrot.slane %v404, %v408
      %v411 = vadd.f32 %v402, %v409
      %v412 = vadd.f32 %v403, %v409
      %v413 = vld [vmem:[%s3] sm:$0xff]
      %v414 = vld [vmem:[%s3 + $0x8] sm:$0xff]
      %v415 = vld [vmem:[%s3 + $0x10] sm:$0xff]
      %v416 = vld [vmem:[%s3 + $0x18] sm:$0xff]
      %v417 = vld [vmem:[%s4] sm:$0x1]
      %v419 = vlaneseq
      %v420 = vshrl.u32 %v419, 7
      %v421 = vsub.s32 0, %v420
      %v422 = vrot.slane %v417, %v421
      %v425 = vsel %vm367, %v411, 0
      %v428 = vsel %vm367, %v412, 0
      %430 = vmatprep.subr.mxu0 0.0
      %431 = vmatpush1.msra.mxu0 %v413
      %432 = vmatprep.subr.mxu0 0.0
      %433 = vmatpush1.msra.mxu0 %v414
      %434 = vmatprep.subr.mxu0 0.0
      %435 = vmatpush1.msra.mxu0 %v415
      %436 = vmatprep.subr.mxu0 0.0
      %437 = vmatpush1.msra.mxu0 %v416
      %438 = vmatprep.subr.mxu0 0.0
      %439 = vmatpush1.msra.mxu0 0.0
      %440 = vmatprep.subr.mxu0 0.0
      %441 = vmatpush1.msra.mxu0 0.0
      %442 = vmatprep.subr.mxu0 0.0
      %443 = vmatpush1.msra.mxu0 0.0
      %444 = vmatprep.subr.mxu0 0.0
      %445 = vmatpush1.msra.mxu0 0.0
      %446 = vmatprep.subr.mxu0 0.0
      %447 = vmatpush1.msra.mxu0 0.0
      %448 = vmatprep.subr.mxu0 0.0
      %449 = vmatpush1.msra.mxu0 0.0
      %450 = vmatprep.subr.mxu0 0.0
      %451 = vmatpush1.msra.mxu0 0.0
      %452 = vmatprep.subr.mxu0 0.0
      %453 = vmatpush1.msra.mxu0 0.0
      %454 = vmatprep.subr.mxu0 0.0
      %455 = vmatpush1.msra.mxu0 0.0
      %456 = vmatprep.subr.mxu0 0.0
      %457 = vmatpush1.msra.mxu0 0.0
      %458 = vmatprep.subr.mxu0 0.0
      %459 = vmatpush1.msra.mxu0 0.0
      %460 = vmatprep.subr.mxu0 0.0
      %461 = vmatpush1.msra.mxu0 0.0
      %462 = vmatprep.subr.mxu0 0.0
      %463 = vmatpush1.msra.mxu0 0.0
      %464 = vmatprep.subr.mxu0 0.0
      %465 = vmatpush1.msra.mxu0 0.0
      %466 = vmatprep.subr.mxu0 0.0
      %467 = vmatpush1.msra.mxu0 0.0
      %468 = vmatprep.subr.mxu0 0.0
      %469 = vmatpush1.msra.mxu0 0.0
      %470 = vmatprep.subr.mxu0 0.0
      %471 = vmatpush1.msra.mxu0 0.0
      %472 = vmatprep.subr.mxu0 0.0
      %473 = vmatpush1.msra.mxu0 0.0
      %474 = vmatprep.subr.mxu0 0.0
      %475 = vmatpush1.msra.mxu0 0.0
      %476 = vmatprep.subr.mxu0 0.0
      %477 = vmatpush1.msra.mxu0 0.0
      %478 = vmatprep.subr.mxu0 0.0
      %479 = vmatpush1.msra.mxu0 0.0
      %480 = vmatprep.subr.mxu0 0.0
      %481 = vmatpush1.msra.mxu0 0.0
      %482 = vmatprep.subr.mxu0 0.0
      %483 = vmatpush1.msra.mxu0 0.0
      %484 = vmatprep.subr.mxu0 0.0
      %485 = vmatpush1.msra.mxu0 0.0
      %486 = vmatprep.subr.mxu0 0.0
      %487 = vmatpush1.msra.mxu0 0.0
      %488 = vmatprep.subr.mxu0 0.0
      %489 = vmatpush1.msra.mxu0 0.0
      %490 = vmatprep.subr.mxu0 0.0
      %491 = vmatpush1.msra.mxu0 0.0
      %492 = vmatprep.subr.mxu0 0.0
      %493 = vmatpush1.msra.mxu0 0.0
      %494 = vmatprep.mubr.f32.mxu0 0.0
      %495 = vmatmul.mubr.f32.gmra.mrb[0].mxu0 %v425
      %v496 = vpop.f32.mrb[0].mxu0
      %v497 = vadd.f32 %v422, %v496
      %v498 = vpop.f32.mrb[0].mxu0
      %499 = vmatprep.mubr.f32.mxu0 0.0
      %500 = vmatmul.mubr.f32.gmra.mrb[0].mxu0 %v428
      %v501 = vpop.f32.mrb[0].mxu0
      %v502 = vadd.f32 %v422, %v501
      %v503 = vpop.f32.mrb[0].mxu0
      %504 = vdwg.mxu0
      %v505 = vmul.f32 %v497, 0.35355338
      %v506 = vmul.f32 %v502, 0.35355338
      %507 = vst.msk [vmem:[%s343] sm:$0xff] %vm367, %v505
      %508 = vst.msk [vmem:[%s343 + $0x8] sm:$0xff] %vm367, %v506
      %511 = vrot.lane.b32.xlu0 %v497, 96
      %v512 = vpop.permute.xlu0 %511
      %513 = vrot.lane.b32.xlu0 %v502, 96
      %v514 = vpop.permute.xlu0 %513
      %517 = vst.msk [vmem:[%s353] sm:$0xff] %vm367, %v512
      %518 = vst.msk [vmem:[%s353 + $0x8] sm:$0xff] %vm367, %v514
      %519 = vrot.lane.b32.xlu0 %v497, 64
      %v520 = vpop.permute.xlu0 %519
      %521 = vrot.lane.b32.xlu0 %v502, 64
      %v522 = vpop.permute.xlu0 %521
      %525 = vst.msk [vmem:[%s363] sm:$0xff] %vm367, %v520
      %526 = vst.msk [vmem:[%s363 + $0x8] sm:$0xff] %vm367, %v522
      %s527 = smul.u32 2, %s24
      %p528 = scmp.lt.s32.totalorder %s23, 1
      %s529 = scalar_select %p528, %s23, 1
      %p530 = scmp.lt.s32.totalorder %s527, 7
      %s531 = scalar_select %p530, %s527, 7
      %s532 = smul.addr %s529, 8
      %s533 = sadd.s32 %s531, %s532
      %s534 = smul.addr %s533, 8
      %s535 = scalar_lea.vmem %s5, %s534
      %s536 = smul.u32 2, %s24
      %p537 = scmp.lt.s32.totalorder %s23, 1
      %s538 = scalar_select %p537, %s23, 1
      %p539 = scmp.lt.s32.totalorder %s536, 7
      %s540 = scalar_select %p539, %s536, 7
      %s541 = smul.addr %s538, 8
      %s542 = sadd.s32 %s540, %s541
      %s543 = smul.addr %s542, 8
      %s544 = scalar_lea.vmem %s6, %s543
      %s545 = smul.u32 2, %s24
      %p546 = scmp.lt.s32.totalorder %s23, 1
      %s547 = scalar_select %p546, %s23, 1
      %p548 = scmp.lt.s32.totalorder %s545, 7
      %s549 = scalar_select %p548, %s545, 7
      %s550 = smul.addr %s547, 8
      %s551 = sadd.s32 %s549, %s550
      %s552 = smul.addr %s551, 8
      %s553 = scalar_lea.vmem %s7, %s552
      // Predicated region
      $region41: #{tpu_custom_call.1} parent=39 // pred_check
        %p554 = pneg %p163
      $region42: #{tpu_custom_call.1} parent=39 // pred_check_branch
        %556 = sbr.rel (%p554) target = $region44
      $region43: #{tpu_custom_call.1} parent=39 // pred_region
        %s557 = smul.u32 2, %s24
      $region44: #{tpu_custom_call.1} parent=39 // pred_fallthru
        _
      // Predicated region
      $region45: #{tpu_custom_call.1} parent=39 // pred_check
        %p558 = pneg %p191
      $region46: #{tpu_custom_call.1} parent=39 // pred_check_branch
        %560 = sbr.rel (%p558) target = $region48
      $region47: #{tpu_custom_call.1} parent=39 // pred_region
        %s561 = smul.u32 2, %s24
      $region48: #{tpu_custom_call.1} parent=39 // pred_fallthru
        _
      // Predicated region
      $region49: #{tpu_custom_call.1} parent=39 // pred_check
        %p562 = pneg %p219
      $region50: #{tpu_custom_call.1} parent=39 // pred_check_branch
        %564 = sbr.rel (%p562) target = $region52
      $region51: #{tpu_custom_call.1} parent=39 // pred_region
        %s565 = smul.u32 2, %s24
      $region52: #{tpu_custom_call.1} parent=39 // pred_fallthru
        _
    $region40: #{tpu_custom_call.1} parent=5 // pred_fallthru
      _
    %p566 = scmp.le.s32.totalorder 2, %s14
    // Predicated region
    $region53: #{tpu_custom_call.1} parent=5 // pred_check
      %p567 = pneg %p566
    $region54: #{tpu_custom_call.1} parent=5 // pred_check_branch
      %569 = sbr.rel (%p567) target = $region56
    $region55: #{tpu_custom_call.1} parent=5 // pred_region
      %s570 = ssub.s32 %s14, 2
      // Predicated region
      $region57: #{tpu_custom_call.1} parent=55 // pred_check
        %p571 = pneg %p169
      $region58: #{tpu_custom_call.1} parent=55 // pred_check_branch
        %573 = sbr.rel (%p571) target = $region60
      $region59: #{tpu_custom_call.1} parent=55 // pred_region
        %s574 = smul.u32 2, %s26
        %p575 = scmp.lt.s32.totalorder %s25, 1
        %s576 = scalar_select %p575, %s25, 1
        %p577 = scmp.lt.s32.totalorder %s574, 7
        %s578 = scalar_select %p577, %s574, 7
        %s579 = smul.addr %s576, 8
        %s580 = sadd.s32 %s578, %s579
        %s581 = smul.addr %s580, 8
        %s582 = scalar_lea.vmem %s5, %s581
      $region60: #{tpu_custom_call.1} parent=55 // pred_fallthru
        _
      // Predicated region
      $region61: #{tpu_custom_call.1} parent=55 // pred_check
        %p583 = pneg %p197
      $region62: #{tpu_custom_call.1} parent=55 // pred_check_branch
        %585 = sbr.rel (%p583) target = $region64
      $region63: #{tpu_custom_call.1} parent=55 // pred_region
        %s586 = smul.u32 2, %s26
        %p587 = scmp.lt.s32.totalorder %s25, 1
        %s588 = scalar_select %p587, %s25, 1
        %p589 = scmp.lt.s32.totalorder %s586, 7
        %s590 = scalar_select %p589, %s586, 7
        %s591 = smul.addr %s588, 8
        %s592 = sadd.s32 %s590, %s591
        %s593 = smul.addr %s592, 8
        %s594 = scalar_lea.vmem %s6, %s593
      $region64: #{tpu_custom_call.1} parent=55 // pred_fallthru
        _
      // Predicated region
      $region65: #{tpu_custom_call.1} parent=55 // pred_check
        %p595 = pneg %p225
      $region66: #{tpu_custom_call.1} parent=55 // pred_check_branch
        %597 = sbr.rel (%p595) target = $region68
      $region67: #{tpu_custom_call.1} parent=55 // pred_region
        %s598 = smul.u32 2, %s26
        %p599 = scmp.lt.s32.totalorder %s25, 1
        %s600 = scalar_select %p599, %s25, 1
        %p601 = scmp.lt.s32.totalorder %s598, 7
        %s602 = scalar_select %p601, %s598, 7
        %s603 = smul.addr %s600, 8
        %s604 = sadd.s32 %s602, %s603
        %s605 = smul.addr %s604, 8
        %s606 = scalar_lea.vmem %s7, %s605
      $region68: #{tpu_custom_call.1} parent=55 // pred_fallthru
        _
    $region56: #{tpu_custom_call.1} parent=5 // pred_fallthru
      _
  $region6: #{tpu_custom_call.1} parent=0 // loop_footer
    %s18 = sadd.s32 1, %s14
  $region7: #{tpu_custom_call.1} parent=0 // loop_footer_branch
    %13 = sbr.rel target = $region3
  $region8: #{tpu_custom_call.1} parent=0 // loop_exit
    _

</llo_original>
